<compile_context>
chip_gen: v5e
topology: v5e:2x2
jax: 0.10.0
libtpu: 0.0.40
codegen_flags: <defaults>
</compile_context>

<pallas_src>
import functools

import jax
import jax.numpy as jnp
from jax.experimental import pallas as pl
from jax.experimental.pallas import tpu as pltpu


def _protonet_kernel(sup_ref, qry_ref, w_ref, b_ref, oh_ref, out_ref,
                     acc_sup, acc_qry):
    """One step of the F-reduction grid (everything below lives in VMEM).

    sup_ref: (Ns, tk)     f32   support-image feature tile
    qry_ref: (Nq, tk)     f32   query-image feature tile
    w_ref:   (tk, D)      f32   backbone Linear weight tile
    b_ref:   (1, D)       f32   backbone Linear bias (same block every step)
    oh_ref:  (Wp, Ns)     bf16  0/1 class-membership matrix (Wp = 128-padded)
    out_ref: (Nq, Wp)     f32   cosine-similarity scores (lane-dense output)
    acc_*:   f32 VMEM accumulators persisting across the reduction axis
    """
    k = pl.program_id(0)

    @pl.when(k == 0)
    def _():
        acc_sup[...] = jnp.zeros_like(acc_sup)
        acc_qry[...] = jnp.zeros_like(acc_qry)

    # Per-tile f32 -> bf16 cast (VPU, hidden under the MXU); accumulation
    # stays f32 via preferred_element_type.
    w_bf = w_ref[...].astype(jnp.bfloat16)
    acc_sup[...] += jnp.dot(sup_ref[...].astype(jnp.bfloat16), w_bf,
                            preferred_element_type=jnp.float32)
    acc_qry[...] += jnp.dot(qry_ref[...].astype(jnp.bfloat16), w_bf,
                            preferred_element_type=jnp.float32)

    @pl.when(k == pl.num_programs(0) - 1)
    def _():
        # Backbone epilogue: bias + ReLU in f32.
        z_sup = jnp.maximum(acc_sup[...] + b_ref[...], 0.0)          # (Ns, D)
        z_qry = jnp.maximum(acc_qry[...] + b_ref[...], 0.0)          # (Nq, D)

        # Per-class prototype *sums* via a 0/1 one-hot matmul.  The 1/count of
        # the reference's mean cancels under cosine normalization, so no divide
        # or prescaling is needed (empty / padded classes give zero rows).
        z_proto = jnp.dot(oh_ref[...], z_sup.astype(jnp.bfloat16),
                          preferred_element_type=jnp.float32)        # (Wp, D)

        # Cosine similarity matching nn.CosineSimilarity(dim=0, eps=1e-6):
        #   dot(q, p) / (max(||q||, eps) * max(||p||, eps))
        # implemented as row-scaling with EUP rsqrt + one MXU dot_general that
        # contracts dim 1 of both operands (no transposes, no divides).
        eps = 1e-6
        inv_q = jax.lax.rsqrt(jnp.maximum(
            jnp.sum(z_qry * z_qry, axis=1, keepdims=True), eps * eps))
        inv_p = jax.lax.rsqrt(jnp.maximum(
            jnp.sum(z_proto * z_proto, axis=1, keepdims=True), eps * eps))
        out_ref[...] = jax.lax.dot_general(
            z_qry * inv_q, z_proto * inv_p,
            dimension_numbers=(((1,), (1,)), ((), ())),
            preferred_element_type=jnp.float32)


def _round_up(x, m):
    return (x + m - 1) // m * m


@functools.partial(jax.jit, static_argnames=("n_way",))
def protonet_forward(support_images, support_labels, query_images, w, b, *,
                     n_way):
    """ProtoNet.forward.

    support_images: (Ns, C, H, W) f32, support_labels: (Ns,) int32 in [0, n_way)
    query_images:   (Nq, C, H, W) f32
    w: (C*H*W, D), b: (D,) — backbone Linear parameters.
    Returns (Nq, n_way) f32 cosine-similarity scores.  (The reference returns
    float64 numpy; we return f32 on TPU.  n_way — data-dependent via
    torch.unique in the reference — is supplied statically.)
    """
    ns = support_images.shape[0]
    nq = query_images.shape[0]
    f, d = w.shape

    LANE = 128
    cls_pad = _round_up(n_way, LANE)      # lane-dense scores -> unmasked vst

    # Feature-reduction tile.  Per-step VMEM is roughly
    #   2 * ((Ns+Nq)*tk + tk*D) * 4B  (double-buffered f32 tiles)
    # + (Ns+Nq)*D * 4B                (accumulators)
    # which at tk=512 / toy row counts is <1 MiB — far below v7x's 64 MiB VMEM
    # and the 32 MiB scoped default; on v5e/v6e bigger tiles amortize the
    # ~0.35 us/step grid overhead.
    tk = 512
    f_pad = _round_up(f, tk)
    num_k = f_pad // tk

    # Flatten NCHW row-major and zero-pad only the reduction dim (a no-op when
    # F is already a multiple of tk).  No bf16 cast and no support/query concat
    # in the wrapper: the cast happens per-tile inside the kernel, so images
    # and weight are read from HBM exactly once.
    sup_flat = jnp.pad(support_images.reshape(ns, -1).astype(jnp.float32),
                       ((0, 0), (0, f_pad - f)))
    qry_flat = jnp.pad(query_images.reshape(nq, -1).astype(jnp.float32),
                       ((0, 0), (0, f_pad - f)))
    w_p = jnp.pad(w.astype(jnp.float32), ((0, f_pad - f), (0, 0)))
    b_p = b.astype(jnp.float32).reshape(1, d)

    # 0/1 class-membership matrix (exact in bf16).  Padded class rows are all
    # zero -> zero prototypes -> ~zero scores, sliced off below.
    classes = jnp.arange(cls_pad, dtype=support_labels.dtype)
    onehot = (support_labels[None, :] == classes[:, None]).astype(jnp.bfloat16)

    flops = (2 * (ns + nq) * f_pad * d        # backbone matmul
             + 2 * cls_pad * ns * d           # prototype one-hot matmul
             + 2 * nq * cls_pad * d)          # cosine score matmul
    bytes_accessed = (4 * ((ns + nq) * f_pad + f_pad * d + d + nq * cls_pad)
                      + 2 * cls_pad * ns)

    grid_spec = pltpu.PrefetchScalarGridSpec(
        num_scalar_prefetch=0,
        grid=(num_k,),
        in_specs=[
            pl.BlockSpec((ns, tk), lambda k: (0, k)),        # support tile
            pl.BlockSpec((nq, tk), lambda k: (0, k)),        # query tile
            pl.BlockSpec((tk, d), lambda k: (k, 0)),         # weight tile
            pl.BlockSpec((1, d), lambda k: (0, 0)),          # bias
            pl.BlockSpec((cls_pad, ns), lambda k: (0, 0)),   # one-hot
        ],
        out_specs=pl.BlockSpec((nq, cls_pad), lambda k: (0, 0)),
        scratch_shapes=[
            pltpu.VMEM((ns, d), jnp.float32),                # support acc
            pltpu.VMEM((nq, d), jnp.float32),                # query acc
        ],
    )

    out = pl.pallas_call(
        _protonet_kernel,
        out_shape=jax.ShapeDtypeStruct((nq, cls_pad), jnp.float32),
        grid_spec=grid_spec,
        compiler_params=pltpu.CompilerParams(
            dimension_semantics=("arbitrary",)),
        cost_estimate=pl.CostEstimate(
            flops=int(flops),
            transcendentals=int(nq + cls_pad),
            bytes_accessed=int(bytes_accessed)),
    )(sup_flat, qry_flat, w_p, b_p, onehot)

    return out[:nq, :n_way]


if __name__ == "__main__":
    # Small, deterministic example: 5-way 2-shot support, 6 queries,
    # images (C=4, H=W=16), backbone feature dim D=32.
    key = jax.random.PRNGKey(0)
    k_sup, k_qry, k_w, k_b = jax.random.split(key, 4)

    n_way, k_shot, n_query = 5, 2, 6
    C, H, W = 4, 16, 16
    D = 32
    F = C * H * W

    support_images = jax.random.normal(k_sup, (n_way * k_shot, C, H, W),
                                       dtype=jnp.float32)
    query_images = jax.random.normal(k_qry, (n_query, C, H, W),
                                     dtype=jnp.float32)
    support_labels = jnp.repeat(jnp.arange(n_way, dtype=jnp.int32), k_shot)

    # Deterministic backbone (Flatten -> Linear -> ReLU) parameters.
    w = jax.random.normal(k_w, (F, D), dtype=jnp.float32) * (1.0 / jnp.sqrt(F))
    b = jax.random.normal(k_b, (D,), dtype=jnp.float32) * 0.01

    scores = protonet_forward(support_images, support_labels, query_images,
                              w, b, n_way=n_way)
    jax.block_until_ready(scores)
    assert scores.shape == (n_query, n_way)

    # Pure-JAX f32 reference (mean prototypes + cosine); bf16 MXU operands in
    # the kernel give ~1e-3-level drift on [-1, 1] cosine scores.
    zs = jnp.maximum(support_images.reshape(support_images.shape[0], -1) @ w + b, 0.0)
    zq = jnp.maximum(query_images.reshape(query_images.shape[0], -1) @ w + b, 0.0)
    protos = jnp.stack([zs[support_labels == c].mean(0) for c in range(n_way)])
    eps = 1e-6
    qn = zq / jnp.maximum(jnp.linalg.norm(zq, axis=1, keepdims=True), eps)
    pn = protos / jnp.maximum(jnp.linalg.norm(protos, axis=1, keepdims=True), eps)
    ref = qn @ pn.T
    assert float(jnp.max(jnp.abs(scores - ref))) < 6e-2

    print("KERNEL_OK")
</pallas_src>

<mosaic_0001>
module attributes {stable_mosaic.version = 11 : i64} {
  func.func @_protonet_kernel(%arg0: i32, %arg1: memref<10x512xf32, #tpu.memory_space<vmem>>, %arg2: memref<6x512xf32, #tpu.memory_space<vmem>>, %arg3: memref<512x32xf32, #tpu.memory_space<vmem>>, %arg4: memref<1x32xf32, #tpu.memory_space<vmem>>, %arg5: memref<128x10xbf16, #tpu.memory_space<vmem>>, %arg6: memref<6x128xf32, #tpu.memory_space<vmem>>, %arg7: memref<10x32xf32, #tpu.memory_space<vmem>>, %arg8: memref<6x32xf32, #tpu.memory_space<vmem>>) attributes {dimension_semantics = [#tpu.dimension_semantics<arbitrary>], iteration_bounds = array<i64: 2>, scalar_prefetch = 0 : i64, scratch_operands = 2 : i64, tpu.core_type = #tpu.core_type<tc>, window_params = [{transform_indices = @transform_0, window_bounds = array<i64: 10, 512>}, {transform_indices = @transform_1, window_bounds = array<i64: 6, 512>}, {transform_indices = @transform_2, window_bounds = array<i64: 512, 32>}, {pipeline_mode = #tpu.pipeline_mode<synchronous>, transform_indices = @transform_3, window_bounds = array<i64: 1, 32>}, {pipeline_mode = #tpu.pipeline_mode<synchronous>, transform_indices = @transform_4, window_bounds = array<i64: 128, 10>}, {pipeline_mode = #tpu.pipeline_mode<synchronous>, transform_indices = @transform_5, window_bounds = array<i64: 6, 128>}]} {
    %c0_i32 = arith.constant 0 : i32
    %0 = arith.cmpi eq, %arg0, %c0_i32 : i32
    %1 = arith.extui %0 : i1 to i32
    %c0_i32_0 = arith.constant 0 : i32
    %2 = arith.cmpi ne, %1, %c0_i32_0 : i32
    scf.if %2 {
      %cst_16 = arith.constant 0.000000e+00 : f32
      %20 = vector.broadcast %cst_16 : f32 to vector<10x32xf32>
      %c0_17 = arith.constant 0 : index
      %c0_18 = arith.constant 0 : index
      %21 = vector.load %arg7[%c0_17, %c0_18] : memref<10x32xf32, #tpu.memory_space<vmem>>, vector<10x32xf32>
      tpu.vector_store %arg7[%c0_17, %c0_18], %20 {strides = array<i32>} : memref<10x32xf32, #tpu.memory_space<vmem>>, vector<10x32xf32>,
      %cst_19 = arith.constant 0.000000e+00 : f32
      %22 = vector.broadcast %cst_19 : f32 to vector<6x32xf32>
      %c0_20 = arith.constant 0 : index
      %c0_21 = arith.constant 0 : index
      %23 = vector.load %arg8[%c0_20, %c0_21] : memref<6x32xf32, #tpu.memory_space<vmem>>, vector<6x32xf32>
      tpu.vector_store %arg8[%c0_20, %c0_21], %22 {strides = array<i32>} : memref<6x32xf32, #tpu.memory_space<vmem>>, vector<6x32xf32>,
    } else {
    }
    %c0 = arith.constant 0 : index
    %c0_1 = arith.constant 0 : index
    %3 = vector.load %arg3[%c0, %c0_1] : memref<512x32xf32, #tpu.memory_space<vmem>>, vector<512x32xf32>
    %4 = arith.truncf %3 : vector<512x32xf32> to vector<512x32xbf16>
    %c0_2 = arith.constant 0 : index
    %c0_3 = arith.constant 0 : index
    %5 = vector.load %arg7[%c0_2, %c0_3] : memref<10x32xf32, #tpu.memory_space<vmem>>, vector<10x32xf32>
    %c0_4 = arith.constant 0 : index
    %c0_5 = arith.constant 0 : index
    %6 = vector.load %arg1[%c0_4, %c0_5] : memref<10x512xf32, #tpu.memory_space<vmem>>, vector<10x512xf32>
    %7 = arith.truncf %6 : vector<10x512xf32> to vector<10x512xbf16>
    %cst = arith.constant dense<0.000000e+00> : vector<10x32xf32>
    %8 = tpu.matmul %7, %4, %cst {dimension_numbers = #tpu.dot_dimension_numbers<[1], [0], [0], [1], [0, 0, 1, 1], [], []>} : vector<10x512xbf16>, vector<512x32xbf16>, vector<10x32xf32> -> vector<10x32xf32>
    %9 = arith.addf %5, %8 : vector<10x32xf32>
    %c0_6 = arith.constant 0 : index
    %c0_7 = arith.constant 0 : index
    %10 = vector.load %arg7[%c0_6, %c0_7] : memref<10x32xf32, #tpu.memory_space<vmem>>, vector<10x32xf32>
    tpu.vector_store %arg7[%c0_6, %c0_7], %9 {strides = array<i32>} : memref<10x32xf32, #tpu.memory_space<vmem>>, vector<10x32xf32>,
    %c0_8 = arith.constant 0 : index
    %c0_9 = arith.constant 0 : index
    %11 = vector.load %arg8[%c0_8, %c0_9] : memref<6x32xf32, #tpu.memory_space<vmem>>, vector<6x32xf32>
    %c0_10 = arith.constant 0 : index
    %c0_11 = arith.constant 0 : index
    %12 = vector.load %arg2[%c0_10, %c0_11] : memref<6x512xf32, #tpu.memory_space<vmem>>, vector<6x512xf32>
    %13 = arith.truncf %12 : vector<6x512xf32> to vector<6x512xbf16>
    %cst_12 = arith.constant dense<0.000000e+00> : vector<6x32xf32>
    %14 = tpu.matmul %13, %4, %cst_12 {dimension_numbers = #tpu.dot_dimension_numbers<[1], [0], [0], [1], [0, 0, 1, 1], [], []>} : vector<6x512xbf16>, vector<512x32xbf16>, vector<6x32xf32> -> vector<6x32xf32>
    %15 = arith.addf %11, %14 : vector<6x32xf32>
    %c0_13 = arith.constant 0 : index
    %c0_14 = arith.constant 0 : index
    %16 = vector.load %arg8[%c0_13, %c0_14] : memref<6x32xf32, #tpu.memory_space<vmem>>, vector<6x32xf32>
    tpu.vector_store %arg8[%c0_13, %c0_14], %15 {strides = array<i32>} : memref<6x32xf32, #tpu.memory_space<vmem>>, vector<6x32xf32>,
    %c1_i32 = arith.constant 1 : i32
    %17 = arith.cmpi eq, %arg0, %c1_i32 : i32
    %18 = arith.extui %17 : i1 to i32
    %c0_i32_15 = arith.constant 0 : i32
    %19 = arith.cmpi ne, %18, %c0_i32_15 : i32
    scf.if %19 {
      %c0_16 = arith.constant 0 : index
      %c0_17 = arith.constant 0 : index
      %20 = vector.load %arg7[%c0_16, %c0_17] : memref<10x32xf32, #tpu.memory_space<vmem>>, vector<10x32xf32>
      %c0_18 = arith.constant 0 : index
      %c0_19 = arith.constant 0 : index
      %21 = vector.load %arg4[%c0_18, %c0_19] : memref<1x32xf32, #tpu.memory_space<vmem>>, vector<1x32xf32>
      %22 = vector.broadcast %21 : vector<1x32xf32> to vector<10x32xf32>
      %23 = arith.addf %20, %22 : vector<10x32xf32>
      %cst_20 = arith.constant 0.000000e+00 : f32
      %24 = vector.broadcast %cst_20 : f32 to vector<10x32xf32>
      %25 = arith.maximumf %23, %24 : vector<10x32xf32>
      %c0_21 = arith.constant 0 : index
      %c0_22 = arith.constant 0 : index
      %26 = vector.load %arg8[%c0_21, %c0_22] : memref<6x32xf32, #tpu.memory_space<vmem>>, vector<6x32xf32>
      %c0_23 = arith.constant 0 : index
      %c0_24 = arith.constant 0 : index
      %27 = vector.load %arg4[%c0_23, %c0_24] : memref<1x32xf32, #tpu.memory_space<vmem>>, vector<1x32xf32>
      %28 = vector.broadcast %27 : vector<1x32xf32> to vector<6x32xf32>
      %29 = arith.addf %26, %28 : vector<6x32xf32>
      %cst_25 = arith.constant 0.000000e+00 : f32
      %30 = vector.broadcast %cst_25 : f32 to vector<6x32xf32>
      %31 = arith.maximumf %29, %30 : vector<6x32xf32>
      %c0_26 = arith.constant 0 : index
      %c0_27 = arith.constant 0 : index
      %32 = vector.load %arg5[%c0_26, %c0_27] : memref<128x10xbf16, #tpu.memory_space<vmem>>, vector<128x10xbf16>
      %33 = arith.truncf %25 : vector<10x32xf32> to vector<10x32xbf16>
      %cst_28 = arith.constant dense<0.000000e+00> : vector<128x32xf32>
      %34 = tpu.matmul %32, %33, %cst_28 {dimension_numbers = #tpu.dot_dimension_numbers<[1], [0], [0], [1], [0, 0, 1, 1], [], []>} : vector<128x10xbf16>, vector<10x32xbf16>, vector<128x32xf32> -> vector<128x32xf32>
      %35 = arith.mulf %31, %31 : vector<6x32xf32>
      %cst_29 = arith.constant dense<0.000000e+00> : vector<6xf32>
      %36 = vector.multi_reduction <add>, %35, %cst_29 [1] : vector<6x32xf32> to vector<6xf32>
      %37 = vector.shape_cast %36 : vector<6xf32> to vector<6x1xf32>
      %cst_30 = arith.constant 9.99999996E-13 : f32
      %38 = vector.broadcast %cst_30 : f32 to vector<6x1xf32>
      %39 = arith.maximumf %37, %38 : vector<6x1xf32>
      %40 = math.rsqrt %39 : vector<6x1xf32>
      %41 = arith.mulf %34, %34 : vector<128x32xf32>
      %cst_31 = arith.constant dense<0.000000e+00> : vector<128xf32>
      %42 = vector.multi_reduction <add>, %41, %cst_31 [1] : vector<128x32xf32> to vector<128xf32>
      %43 = vector.shape_cast %42 : vector<128xf32> to vector<128x1xf32>
      %cst_32 = arith.constant 9.99999996E-13 : f32
      %44 = vector.broadcast %cst_32 : f32 to vector<128x1xf32>
      %45 = arith.maximumf %43, %44 : vector<128x1xf32>
      %46 = math.rsqrt %45 : vector<128x1xf32>
      %47 = vector.broadcast %40 : vector<6x1xf32> to vector<6x32xf32>
      %48 = arith.mulf %31, %47 : vector<6x32xf32>
      %49 = vector.broadcast %46 : vector<128x1xf32> to vector<128x32xf32>
      %50 = arith.mulf %34, %49 : vector<128x32xf32>
      %cst_33 = arith.constant dense<0.000000e+00> : vector<6x128xf32>
      %51 = tpu.matmul %48, %50, %cst_33 {dimension_numbers = #tpu.dot_dimension_numbers<[1], [1], [0], [0], [0, 0, 1, 0], [], []>} : vector<6x32xf32>, vector<128x32xf32>, vector<6x128xf32> -> vector<6x128xf32>
      %c0_34 = arith.constant 0 : index
      %c0_35 = arith.constant 0 : index
      %52 = vector.load %arg6[%c0_34, %c0_35] : memref<6x128xf32, #tpu.memory_space<vmem>>, vector<6x128xf32>
      tpu.vector_store %arg6[%c0_34, %c0_35], %51 {strides = array<i32>} : memref<6x128xf32, #tpu.memory_space<vmem>>, vector<6x128xf32>,
    } else {
    }
    return
  }
  func.func @transform_0(%arg0: i32) -> (i32, i32) {
    %c0_i32 = arith.constant 0 : i32
    %c0_i32_0 = arith.constant 0 : i32
    return %c0_i32, %arg0 : i32, i32
  }
  func.func @transform_1(%arg0: i32) -> (i32, i32) {
    %c0_i32 = arith.constant 0 : i32
    %c0_i32_0 = arith.constant 0 : i32
    return %c0_i32, %arg0 : i32, i32
  }
  func.func @transform_2(%arg0: i32) -> (i32, i32) {
    %c0_i32 = arith.constant 0 : i32
    %c0_i32_0 = arith.constant 0 : i32
    return %arg0, %c0_i32 : i32, i32
  }
  func.func @transform_3(%arg0: i32) -> (i32, i32) {
    %c0_i32 = arith.constant 0 : i32
    %c0_i32_0 = arith.constant 0 : i32
    %c0_i32_1 = arith.constant 0 : i32
    return %c0_i32, %c0_i32_0 : i32, i32
  }
  func.func @transform_4(%arg0: i32) -> (i32, i32) {
    %c0_i32 = arith.constant 0 : i32
    %c0_i32_0 = arith.constant 0 : i32
    %c0_i32_1 = arith.constant 0 : i32
    return %c0_i32, %c0_i32_0 : i32, i32
  }
  func.func @transform_5(%arg0: i32) -> (i32, i32) {
    %c0_i32 = arith.constant 0 : i32
    %c0_i32_0 = arith.constant 0 : i32
    %c0_i32_1 = arith.constant 0 : i32
    return %c0_i32, %c0_i32_0 : i32, i32
  }
}

</mosaic_0001>

<llo_original>
// kernel: protonet_forward.1
$region0: #{protonet_forward.1}
  #allocation0 [shape = 'u32[]', space=smem, size = 0x4, offset = 0x4, fixed_abs, tag = 'smem constant byte address 0x4 - core index']
  #allocation1 [shape = 'u32[72,128]{1,0:T(1,128)}', space=vmem, size = 0x9000, scoped, tag = 'internal scratch']
  #allocation2 [shape = 'f32[10,32]{1,0:T(8,128)}', space=vmem, size = 0x2000, scoped, tag = 'scratch operand']
  #allocation3 [shape = 'f32[6,32]{1,0:T(8,128)}', space=vmem, size = 0x1000, scoped, tag = 'scratch operand']
  %s0 = inlined_call_operand.vmem [shape: f32[10,1024], index: 0, kind: input, shape index: {}]
  %s1 = inlined_call_operand.vmem [shape: f32[6,1024], index: 1, kind: input, shape index: {}]
  %s2 = inlined_call_operand.vmem [shape: f32[1024,32], index: 2, kind: input, shape index: {}]
  %s3 = inlined_call_operand.vmem [shape: f32[1,32], index: 3, kind: input, shape index: {}]
  %s4 = inlined_call_operand.vmem [shape: bf16[128,10], index: 4, kind: input, shape index: {}]
  %s5 = inlined_call_operand.hbm [shape: f32[6,128], index: 5, kind: output, shape index: {}]
  %s6 = sld [smem:[#allocation0]]
  $region84: #{protonet_forward.1} parent=0
    _
  %s8 = ssub.s32 1, %s6
  %s9 = scalar_select 0, %s8, %s6
  $region1: #{protonet_forward.1} parent=0
    #allocation4 [shape = 'u8[65536]{0}', space=vmem, size = 0x10000, scoped, tag = 'input window, operand 0']
    #allocation5 [shape = 'u8[4096]{0}', space=vmem, size = 0x1000, scoped, tag = 'output window, operand 0, single buffered']
    #allocation6 [shape = 's32[2]{0}', space=sflag, size = 0x8, scoped, tag = 'scoped memory for protonet_forward.1']
    %10 = vsyncpa [#allocation6], 0
    loop: start=0, step=1, limit=4
    $region2: #{protonet_forward.1} parent=1 // loop_pre_header
      _
    $region3: #{protonet_forward.1} parent=1 // loop_header
      %s12 = sphi 0, %s16
      %p13 = scmp.ge.s32.totalorder %s12, 4
      %s22 = sphi 0, %s24
      %s25 = sphi 0, %s22
      %s26 = sphi 0, %s25
      %s42 = sphi 0, %s26
      %s48 = sphi 0, %s50
      %s51 = sphi 0, %s48
      %s52 = sphi 0, %s51
      %s68 = sphi 0, %s52
      %s74 = sphi 0, %s76
      %s77 = sphi 0, %s74
      %s78 = sphi 0, %s77
      %s94 = sphi 0, %s78
      %s98 = sphi 0, %s98
      %s100 = sphi 0, %s98
      %s101 = sphi 0, %s100
      %s115 = sphi 0, %s101
      %s119 = sphi 0, %s119
      %s121 = sphi 0, %s119
      %s122 = sphi 0, %s121
      %s136 = sphi 0, %s122
      %s140 = sphi 0, %s140
      %s142 = sphi 0, %s140
      %s143 = sphi 0, %s142
      %s157 = sphi 0, %s143
    $region4: #{protonet_forward.1} parent=1 // loop_header_branch
      %15 = sbr.rel (%p13) target = $region8
    $region5: #{protonet_forward.1} parent=1 // loop_body
      %s17 = ssub.s32 %s12, 1
      %s18 = ssub.s32 %s12, 2
      %s19 = sadd.s32 %s12, 1
      %s20 = ssub.s32 %s12, %s19
      %p21 = scmp.eq.s32.totalorder %s20, 0
      %s23 = sadd.s32 %s22, 1
      %s24 = scalar_select %p21, %s22, %s23
      %p27 = pneg %p21
      %p28 = scmp.eq.s32.totalorder %s12, 1
      %p29 = por %p27, %p28
      %p30 = scmp.ne.s32.totalorder %s22, %s25
      %p31 = scmp.eq.s32.totalorder %s12, 0
      %p32 = por %p30, %p31
      %p33 = scmp.ne.s32.totalorder %s22, %s25
      %p34 = scmp.eq.s32.totalorder %s17, 1
      %p35 = por %p33, %p34
      %p36 = scmp.ne.s32.totalorder %s25, %s26
      %p37 = scmp.eq.s32.totalorder %s17, 0
      %p38 = por %p36, %p37
      %p39 = scmp.ne.s32.totalorder %s25, %s26
      %p40 = scmp.eq.s32.totalorder %s18, 1
      %p41 = por %p39, %p40
      %p43 = scmp.ne.s32.totalorder %s26, %s42
      %p44 = scmp.eq.s32.totalorder %s18, 0
      %p45 = por %p43, %p44
      %s46 = ssub.s32 %s12, %s19
      %p47 = scmp.eq.s32.totalorder %s46, 0
      %s49 = sadd.s32 %s48, 1
      %s50 = scalar_select %p47, %s48, %s49
      %p53 = pneg %p47
      %p54 = scmp.eq.s32.totalorder %s12, 1
      %p55 = por %p53, %p54
      %p56 = scmp.ne.s32.totalorder %s48, %s51
      %p57 = scmp.eq.s32.totalorder %s12, 0
      %p58 = por %p56, %p57
      %p59 = scmp.ne.s32.totalorder %s48, %s51
      %p60 = scmp.eq.s32.totalorder %s17, 1
      %p61 = por %p59, %p60
      %p62 = scmp.ne.s32.totalorder %s51, %s52
      %p63 = scmp.eq.s32.totalorder %s17, 0
      %p64 = por %p62, %p63
      %p65 = scmp.ne.s32.totalorder %s51, %s52
      %p66 = scmp.eq.s32.totalorder %s18, 1
      %p67 = por %p65, %p66
      %p69 = scmp.ne.s32.totalorder %s52, %s68
      %p70 = scmp.eq.s32.totalorder %s18, 0
      %p71 = por %p69, %p70
      %s72 = ssub.s32 %s12, %s19
      %p73 = scmp.eq.s32.totalorder %s72, 0
      %s75 = sadd.s32 %s74, 1
      %s76 = scalar_select %p73, %s74, %s75
      %p79 = pneg %p73
      %p80 = scmp.eq.s32.totalorder %s12, 1
      %p81 = por %p79, %p80
      %p82 = scmp.ne.s32.totalorder %s74, %s77
      %p83 = scmp.eq.s32.totalorder %s12, 0
      %p84 = por %p82, %p83
      %p85 = scmp.ne.s32.totalorder %s74, %s77
      %p86 = scmp.eq.s32.totalorder %s17, 1
      %p87 = por %p85, %p86
      %p88 = scmp.ne.s32.totalorder %s77, %s78
      %p89 = scmp.eq.s32.totalorder %s17, 0
      %p90 = por %p88, %p89
      %p91 = scmp.ne.s32.totalorder %s77, %s78
      %p92 = scmp.eq.s32.totalorder %s18, 1
      %p93 = por %p91, %p92
      %p95 = scmp.ne.s32.totalorder %s78, %s94
      %p96 = scmp.eq.s32.totalorder %s18, 0
      %p97 = por %p95, %p96
      %s99 = sadd.s32 %s98, 1
      %p102 = scmp.eq.s32.totalorder %s12, 1
      %p103 = scmp.ne.s32.totalorder %s98, %s100
      %p104 = scmp.eq.s32.totalorder %s12, 0
      %p105 = por %p103, %p104
      %p106 = scmp.ne.s32.totalorder %s98, %s100
      %p107 = scmp.eq.s32.totalorder %s17, 1
      %p108 = por %p106, %p107
      %p109 = scmp.ne.s32.totalorder %s100, %s101
      %p110 = scmp.eq.s32.totalorder %s17, 0
      %p111 = por %p109, %p110
      %p112 = scmp.ne.s32.totalorder %s100, %s101
      %p113 = scmp.eq.s32.totalorder %s18, 1
      %p114 = por %p112, %p113
      %p116 = scmp.ne.s32.totalorder %s101, %s115
      %p117 = scmp.eq.s32.totalorder %s18, 0
      %p118 = por %p116, %p117
      %s120 = sadd.s32 %s119, 1
      %p123 = scmp.eq.s32.totalorder %s12, 1
      %p124 = scmp.ne.s32.totalorder %s119, %s121
      %p125 = scmp.eq.s32.totalorder %s12, 0
      %p126 = por %p124, %p125
      %p127 = scmp.ne.s32.totalorder %s119, %s121
      %p128 = scmp.eq.s32.totalorder %s17, 1
      %p129 = por %p127, %p128
      %p130 = scmp.ne.s32.totalorder %s121, %s122
      %p131 = scmp.eq.s32.totalorder %s17, 0
      %p132 = por %p130, %p131
      %p133 = scmp.ne.s32.totalorder %s121, %s122
      %p134 = scmp.eq.s32.totalorder %s18, 1
      %p135 = por %p133, %p134
      %p137 = scmp.ne.s32.totalorder %s122, %s136
      %p138 = scmp.eq.s32.totalorder %s18, 0
      %p139 = por %p137, %p138
      %s141 = sadd.s32 %s140, 1
      %p144 = scmp.eq.s32.totalorder %s12, 1
      %p145 = scmp.ne.s32.totalorder %s140, %s142
      %p146 = scmp.eq.s32.totalorder %s12, 0
      %p147 = por %p145, %p146
      %p148 = scmp.ne.s32.totalorder %s140, %s142
      %p149 = scmp.eq.s32.totalorder %s17, 1
      %p150 = por %p148, %p149
      %p151 = scmp.ne.s32.totalorder %s142, %s143
      %p152 = scmp.eq.s32.totalorder %s17, 0
      %p153 = por %p151, %p152
      %p154 = scmp.ne.s32.totalorder %s142, %s143
      %p155 = scmp.eq.s32.totalorder %s18, 1
      %p156 = por %p154, %p155
      %p158 = scmp.ne.s32.totalorder %s143, %s157
      %p159 = scmp.eq.s32.totalorder %s18, 0
      %p160 = por %p158, %p159
      %p161 = scmp.le.s32.totalorder 1, %s12
      %p162 = scmp.lt.s32.totalorder %s12, 3
      %p163 = pnand %p161, %p162
      %p164 = pneg %p163
      // Predicated region
      $region9: #{protonet_forward.1} parent=5 // pred_check
        _
      $region10: #{protonet_forward.1} parent=5 // pred_check_branch
        %166 = sbr.rel (%p163) target = $region12
      $region11: #{protonet_forward.1} parent=5 // pred_region
        %s167 = ssub.s32 %s12, 1
        // Predicated region
        $region13: #{protonet_forward.1} parent=11 // pred_check
          %p168 = pneg %p111
        $region14: #{protonet_forward.1} parent=11 // pred_check_branch
          %170 = sbr.rel (%p168) target = $region16
        $region15: #{protonet_forward.1} parent=11 // pred_region
          _
        $region16: #{protonet_forward.1} parent=11 // pred_fallthru
          _
        // Predicated region
        $region17: #{protonet_forward.1} parent=11 // pred_check
          %p171 = pneg %p132
        $region18: #{protonet_forward.1} parent=11 // pred_check_branch
          %173 = sbr.rel (%p171) target = $region20
        $region19: #{protonet_forward.1} parent=11 // pred_region
          _
        $region20: #{protonet_forward.1} parent=11 // pred_fallthru
          _
      $region12: #{protonet_forward.1} parent=5 // pred_fallthru
        _
      %p174 = scmp.lt.s32.totalorder %s12, 2
      // Predicated region
      $region21: #{protonet_forward.1} parent=5 // pred_check
        %p175 = pneg %p174
      $region22: #{protonet_forward.1} parent=5 // pred_check_branch
        %177 = sbr.rel (%p175) target = $region24
      $region23: #{protonet_forward.1} parent=5 // pred_region
        // Predicated region
        $region25: #{protonet_forward.1} parent=23 // pred_check
          %p178 = pneg %p32
        $region26: #{protonet_forward.1} parent=23 // pred_check_branch
          %180 = sbr.rel (%p178) target = $region28
        $region27: #{protonet_forward.1} parent=23 // pred_region
          %s181 = sand.u32 %s22, 1
          %s182 = sand.u32 %s22, 1
          %s183 = smul.addr %s182, 64
          %s184 = scalar_lea.vmem [#allocation4], %s183
          %s185 = smul.u32 4, %s12
          %s186 = smul.addr %s185, 8
          %s187 = scalar_lea.vmem %s0, %s186
          // Predicated region
          $region29: #{protonet_forward.1} parent=27 // pred_check
            _
          $region30: #{protonet_forward.1} parent=27 // pred_check_branch
            %189 = sbr.rel (0) target = $region32
          $region31: #{protonet_forward.1} parent=27 // pred_region
            // Predicated region
            $region33: #{protonet_forward.1} parent=31 // pred_check
              _
            $region34: #{protonet_forward.1} parent=31 // pred_check_branch
              %191 = sbr.rel (0) target = $region36
            $region35: #{protonet_forward.1} parent=31 // pred_region
              loop: start=0, step=1, limit=1
              $region37: #{protonet_forward.1} parent=35 // loop_pre_header
                _
              $region38: #{protonet_forward.1} parent=35 // loop_header
                %s193 = sphi 0, %s197
                %p194 = scmp.ge.s32.totalorder %s193, 1
                %s198 = sphi %s187, %s187
                %s199 = sphi %s184, %s184
              $region39: #{protonet_forward.1} parent=35 // loop_header_branch
                %196 = sbr.rel (%p194) target = $region43
              $region40: #{protonet_forward.1} parent=35 // loop_body
                %v200 = vld [vmem:[%s198] sm:$0xff]
                %201 = vst [vmem:[%s199] sm:$0xff] %v200
                %v202 = vld [vmem:[%s198 + $0x8] sm:$0xff]
                %203 = vst [vmem:[%s199 + $0x8] sm:$0xff] %v202
                %v204 = vld [vmem:[%s198 + $0x10] sm:$0xff]
                %205 = vst [vmem:[%s199 + $0x10] sm:$0xff] %v204
                %v206 = vld [vmem:[%s198 + $0x18] sm:$0xff]
                %207 = vst [vmem:[%s199 + $0x18] sm:$0xff] %v206
                %v208 = vld [vmem:[%s198 + $0x40] sm:$0xff]
                %209 = vst [vmem:[%s199 + $0x20] sm:$0xff] %v208
                %v210 = vld [vmem:[%s198 + $0x48] sm:$0xff]
                %211 = vst [vmem:[%s199 + $0x28] sm:$0xff] %v210
                %v212 = vld [vmem:[%s198 + $0x50] sm:$0xff]
                %213 = vst [vmem:[%s199 + $0x30] sm:$0xff] %v212
                %v214 = vld [vmem:[%s198 + $0x58] sm:$0xff]
                %215 = vst [vmem:[%s199 + $0x38] sm:$0xff] %v214
              $region41: #{protonet_forward.1} parent=35 // loop_footer
                %s197 = sadd.s32 1, %s193
              $region42: #{protonet_forward.1} parent=35 // loop_footer_branch
                %192 = sbr.rel target = $region38
              $region43: #{protonet_forward.1} parent=35 // loop_exit
                _
            $region36: #{protonet_forward.1} parent=31 // pred_fallthru
              _
            // Predicated region
            $region44: #{protonet_forward.1} parent=31 // pred_check
              _
            $region45: #{protonet_forward.1} parent=31 // pred_check_branch
              %217 = sbr.rel target = $region47
            $region46: #{protonet_forward.1} parent=31 // pred_region
              _
            $region47: #{protonet_forward.1} parent=31 // pred_fallthru
              _
          $region32: #{protonet_forward.1} parent=27 // pred_fallthru
            _
          %218 = vnop
        $region28: #{protonet_forward.1} parent=23 // pred_fallthru
          _
        // Predicated region
        $region48: #{protonet_forward.1} parent=23 // pred_check
          %p219 = pneg %p58
        $region49: #{protonet_forward.1} parent=23 // pred_check_branch
          %221 = sbr.rel (%p219) target = $region51
        $region50: #{protonet_forward.1} parent=23 // pred_region
          %s222 = smul.u32 4, %s12
          %p223 = scmp.lt.s32.totalorder %s222, 7
          %s224 = scalar_select %p223, %s222, 7
          %s225 = smul.addr %s224, 8
          %s226 = scalar_lea.vmem %s1, %s225
          %s227 = smul.u32 4, %s12
        $region51: #{protonet_forward.1} parent=23 // pred_fallthru
          _
        // Predicated region
        $region52: #{protonet_forward.1} parent=23 // pred_check
          %p228 = pneg %p84
        $region53: #{protonet_forward.1} parent=23 // pred_check_branch
          %230 = sbr.rel (%p228) target = $region55
        $region54: #{protonet_forward.1} parent=23 // pred_region
          %s231 = smul.u32 64, %s12
          %p232 = scmp.lt.s32.totalorder %s231, 127
          %s233 = scalar_select %p232, %s231, 127
          %s234 = smul.addr %s233, 8
          %s235 = scalar_lea.vmem %s2, %s234
          %s236 = smul.u32 64, %s12
        $region55: #{protonet_forward.1} parent=23 // pred_fallthru
          _
      $region24: #{protonet_forward.1} parent=5 // pred_fallthru
        _
      %p237 = scmp.le.s32.totalorder 1, %s12
      %p238 = scmp.lt.s32.totalorder %s12, 3
      %p239 = pnand %p237, %p238
      %p240 = pneg %p239
      // Predicated region
      $region56: #{protonet_forward.1} parent=5 // pred_check
        _
      $region57: #{protonet_forward.1} parent=5 // pred_check_branch
        %242 = sbr.rel (%p239) target = $region59
      $region58: #{protonet_forward.1} parent=5 // pred_region
        %s243 = ssub.s32 %s12, 1
        %s244 = sand.u32 %s25, 1
        %s245 = sand.u32 %s25, 1
        %s246 = smul.addr %s245, 64
        %s247 = scalar_lea.vmem [#allocation4], %s246
        // Predicated region
        $region60: #{protonet_forward.1} parent=58 // pred_check
          %p248 = pneg %p38
        $region61: #{protonet_forward.1} parent=58 // pred_check_branch
          %250 = sbr.rel (%p248) target = $region63
        $region62: #{protonet_forward.1} parent=58 // pred_region
          _
        $region63: #{protonet_forward.1} parent=58 // pred_fallthru
          _
        %s251 = sand.u32 %s25, 1
        %s252 = sand.u32 %s25, 1
        %s253 = smul.addr %s252, 64
        %s254 = scalar_lea.vmem [#allocation4], %s253
        %p255 = pneg %p38
        %p256 = pneg %p35
        %s257 = smul.u32 4, %s17
        %p258 = scmp.lt.s32.totalorder %s257, 7
        %s259 = scalar_select %p258, %s257, 7
        %s260 = smul.addr %s259, 8
        %s261 = scalar_lea.vmem %s1, %s260
        %p262 = pneg %p64
        %p263 = pneg %p61
        %s264 = smul.u32 64, %s17
        %p265 = scmp.lt.s32.totalorder %s264, 127
        %s266 = scalar_select %p265, %s264, 127
        %s267 = smul.addr %s266, 8
        %s268 = scalar_lea.vmem %s2, %s267
        %p269 = pneg %p90
        %p270 = pneg %p87
        %p271 = pneg %p111
        %p272 = pneg %p108
        %p273 = pneg %p132
        %p274 = pneg %p129
        %p275 = pneg %p153
        %p276 = pneg %p150
        %s277 = smul.u32 4, %s17
        %s278 = smul.u32 4, %s17
        %p279 = scmp.lt.s32.totalorder %s278, 7
        %s280 = scalar_select %p279, %s278, 7
        %s281 = smul.addr %s280, 8
        %s282 = scalar_lea.vmem %s1, %s281
        %s283 = smul.u32 4, %s17
        %s284 = smul.u32 64, %s17
        %p285 = scmp.lt.s32.totalorder %s284, 127
        %s286 = scalar_select %p285, %s284, 127
        %s287 = smul.addr %s286, 8
        %s288 = scalar_lea.vmem %s2, %s287
        %s289 = smul.u32 64, %s17
        %p291 = scmp.eq.s32.totalorder %s17, 0
        // Predicated region
        $region64: #{protonet_forward.1} parent=58 // pred_check
          %p292 = pneg %p291
        $region65: #{protonet_forward.1} parent=58 // pred_check_branch
          %294 = sbr.rel (%p292) target = $region67
        $region66: #{protonet_forward.1} parent=58 // pred_region
          %vm295 = vcmask 261120
          %296 = vst.msk [vmem:[#allocation2] sm:$0xff] %vm295, 0.0
          %vm297 = vcmask 254976
          %298 = vst.msk [vmem:[#allocation2 + $0x8] sm:$0x3] %vm297, 0.0
          %vm299 = vcmask 259072
          %300 = vst.msk [vmem:[#allocation3] sm:$0x3f] %vm299, 0.0
        $region67: #{protonet_forward.1} parent=58 // pred_fallthru
          _
        %v301 = vld [vmem:[%s288] sm:$0xff]
        %v302 = vld [vmem:[%s288 + $0x8] sm:$0xff]
        %v303 = vld [vmem:[%s288 + $0x10] sm:$0xff]
        %v304 = vld [vmem:[%s288 + $0x18] sm:$0xff]
        %v305 = vld [vmem:[%s288 + $0x20] sm:$0xff]
        %v306 = vld [vmem:[%s288 + $0x28] sm:$0xff]
        %v307 = vld [vmem:[%s288 + $0x30] sm:$0xff]
        %v308 = vld [vmem:[%s288 + $0x38] sm:$0xff]
        %v309 = vld [vmem:[%s288 + $0x40] sm:$0xff]
        %v310 = vld [vmem:[%s288 + $0x48] sm:$0xff]
        %v311 = vld [vmem:[%s288 + $0x50] sm:$0xff]
        %v312 = vld [vmem:[%s288 + $0x58] sm:$0xff]
        %v313 = vld [vmem:[%s288 + $0x60] sm:$0xff]
        %v314 = vld [vmem:[%s288 + $0x68] sm:$0xff]
        %v315 = vld [vmem:[%s288 + $0x70] sm:$0xff]
        %v316 = vld [vmem:[%s288 + $0x78] sm:$0xff]
        %v317 = vld [vmem:[%s288 + $0x80] sm:$0xff]
        %v318 = vld [vmem:[%s288 + $0x88] sm:$0xff]
        %v319 = vld [vmem:[%s288 + $0x90] sm:$0xff]
        %v320 = vld [vmem:[%s288 + $0x98] sm:$0xff]
        %v321 = vld [vmem:[%s288 + $0xa0] sm:$0xff]
        %v322 = vld [vmem:[%s288 + $0xa8] sm:$0xff]
        %v323 = vld [vmem:[%s288 + $0xb0] sm:$0xff]
        %v324 = vld [vmem:[%s288 + $0xb8] sm:$0xff]
        %v325 = vld [vmem:[%s288 + $0xc0] sm:$0xff]
        %v326 = vld [vmem:[%s288 + $0xc8] sm:$0xff]
        %v327 = vld [vmem:[%s288 + $0xd0] sm:$0xff]
        %v328 = vld [vmem:[%s288 + $0xd8] sm:$0xff]
        %v329 = vld [vmem:[%s288 + $0xe0] sm:$0xff]
        %v330 = vld [vmem:[%s288 + $0xe8] sm:$0xff]
        %v331 = vld [vmem:[%s288 + $0xf0] sm:$0xff]
        %v332 = vld [vmem:[%s288 + $0xf8] sm:$0xff]
        %v333 = vld [vmem:[%s288 + $0x100] sm:$0xff]
        %v334 = vld [vmem:[%s288 + $0x108] sm:$0xff]
        %v335 = vld [vmem:[%s288 + $0x110] sm:$0xff]
        %v336 = vld [vmem:[%s288 + $0x118] sm:$0xff]
        %v337 = vld [vmem:[%s288 + $0x120] sm:$0xff]
        %v338 = vld [vmem:[%s288 + $0x128] sm:$0xff]
        %v339 = vld [vmem:[%s288 + $0x130] sm:$0xff]
        %v340 = vld [vmem:[%s288 + $0x138] sm:$0xff]
        %v341 = vld [vmem:[%s288 + $0x140] sm:$0xff]
        %v342 = vld [vmem:[%s288 + $0x148] sm:$0xff]
        %v343 = vld [vmem:[%s288 + $0x150] sm:$0xff]
        %v344 = vld [vmem:[%s288 + $0x158] sm:$0xff]
        %v345 = vld [vmem:[%s288 + $0x160] sm:$0xff]
        %v346 = vld [vmem:[%s288 + $0x168] sm:$0xff]
        %v347 = vld [vmem:[%s288 + $0x170] sm:$0xff]
        %v348 = vld [vmem:[%s288 + $0x178] sm:$0xff]
        %v349 = vld [vmem:[%s288 + $0x180] sm:$0xff]
        %v350 = vld [vmem:[%s288 + $0x188] sm:$0xff]
        %v351 = vld [vmem:[%s288 + $0x190] sm:$0xff]
        %v352 = vld [vmem:[%s288 + $0x198] sm:$0xff]
        %v353 = vld [vmem:[%s288 + $0x1a0] sm:$0xff]
        %v354 = vld [vmem:[%s288 + $0x1a8] sm:$0xff]
        %v355 = vld [vmem:[%s288 + $0x1b0] sm:$0xff]
        %v356 = vld [vmem:[%s288 + $0x1b8] sm:$0xff]
        %v357 = vld [vmem:[%s288 + $0x1c0] sm:$0xff]
        %v358 = vld [vmem:[%s288 + $0x1c8] sm:$0xff]
        %v359 = vld [vmem:[%s288 + $0x1d0] sm:$0xff]
        %v360 = vld [vmem:[%s288 + $0x1d8] sm:$0xff]
        %v361 = vld [vmem:[%s288 + $0x1e0] sm:$0xff]
        %v362 = vld [vmem:[%s288 + $0x1e8] sm:$0xff]
        %v363 = vld [vmem:[%s288 + $0x1f0] sm:$0xff]
        %v364 = vld [vmem:[%s288 + $0x1f8] sm:$0xff]
        %v365 = vpack.c.bf16 %v302, %v301
        %v366 = vpack.c.bf16 %v304, %v303
        %v367 = vpack.c.bf16 %v306, %v305
        %v368 = vpack.c.bf16 %v308, %v307
        %v369 = vpack.c.bf16 %v310, %v309
        %v370 = vpack.c.bf16 %v312, %v311
        %v371 = vpack.c.bf16 %v314, %v313
        %v372 = vpack.c.bf16 %v316, %v315
        %v373 = vpack.c.bf16 %v318, %v317
        %v374 = vpack.c.bf16 %v320, %v319
        %v375 = vpack.c.bf16 %v322, %v321
        %v376 = vpack.c.bf16 %v324, %v323
        %v377 = vpack.c.bf16 %v326, %v325
        %v378 = vpack.c.bf16 %v328, %v327
        %v379 = vpack.c.bf16 %v330, %v329
        %v380 = vpack.c.bf16 %v332, %v331
        %v381 = vpack.c.bf16 %v334, %v333
        %v382 = vpack.c.bf16 %v336, %v335
        %v383 = vpack.c.bf16 %v338, %v337
        %v384 = vpack.c.bf16 %v340, %v339
        %v385 = vpack.c.bf16 %v342, %v341
        %v386 = vpack.c.bf16 %v344, %v343
        %v387 = vpack.c.bf16 %v346, %v345
        %v388 = vpack.c.bf16 %v348, %v347
        %v389 = vpack.c.bf16 %v350, %v349
        %v390 = vpack.c.bf16 %v352, %v351
        %v391 = vpack.c.bf16 %v354, %v353
        %v392 = vpack.c.bf16 %v356, %v355
        %v393 = vpack.c.bf16 %v358, %v357
        %v394 = vpack.c.bf16 %v360, %v359
        %v395 = vpack.c.bf16 %v362, %v361
        %v396 = vpack.c.bf16 %v364, %v363
        %v397 = vld [vmem:[#allocation2] sm:$0xff]
        %v398 = vld [vmem:[#allocation2 + $0x8] sm:$0x3]
        %v399 = vld [vmem:[%s247] sm:$0xff]
        %v400 = vld [vmem:[%s247 + $0x8] sm:$0xff]
        %v401 = vld [vmem:[%s247 + $0x10] sm:$0xff]
        %v402 = vld [vmem:[%s247 + $0x18] sm:$0xff]
        %v403 = vld [vmem:[%s247 + $0x20] sm:$0x3]
        %v404 = vld [vmem:[%s247 + $0x28] sm:$0x3]
        %v405 = vld [vmem:[%s247 + $0x30] sm:$0x3]
        %v406 = vld [vmem:[%s247 + $0x38] sm:$0x3]
        %v407 = vpack.c.bf16 %v403, %v399
        %v408 = vpack.c.bf16 %v404, %v400
        %v409 = vpack.c.bf16 %v405, %v401
        %v410 = vpack.c.bf16 %v406, %v402
        %411 = vmatpush.bf16.msra.mxu0 %v372
        %412 = vmatpush.bf16.msra.mxu0 %v371
        %413 = vmatpush.bf16.msra.mxu0 %v370
        %414 = vmatpush.bf16.msra.mxu0 %v369
        %415 = vmatpush.bf16.msra.mxu0 %v368
        %416 = vmatpush.bf16.msra.mxu0 %v367
        %417 = vmatpush.bf16.msra.mxu0 %v366
        %418 = vmatpush.bf16.msra.mxu0 %v365
        %419 = vmatmul.bf16.gmra.mxu0 %v407
        %v420 = vpop.f32.mrf.mxu0
        %v421 = vadd.f32 0.0, %v420
        %v422 = vpop.f32.mrf.mxu0
        %v423 = vadd.f32 0.0, %v422
        %424 = vdwg.mxu0
        %425 = vmatpush.bf16.msra.mxu0 %v380
        %426 = vmatpush.bf16.msra.mxu0 %v379
        %427 = vmatpush.bf16.msra.mxu0 %v378
        %428 = vmatpush.bf16.msra.mxu0 %v377
        %429 = vmatpush.bf16.msra.mxu0 %v376
        %430 = vmatpush.bf16.msra.mxu0 %v375
        %431 = vmatpush.bf16.msra.mxu0 %v374
        %432 = vmatpush.bf16.msra.mxu0 %v373
        %433 = vmatmul.bf16.gmra.mxu0 %v408
        %v434 = vpop.f32.mrf.mxu0
        %v435 = vadd.f32 %v421, %v434
        %v436 = vpop.f32.mrf.mxu0
        %v437 = vadd.f32 %v423, %v436
        %438 = vdwg.mxu0
        %439 = vmatpush.bf16.msra.mxu0 %v388
        %440 = vmatpush.bf16.msra.mxu0 %v387
        %441 = vmatpush.bf16.msra.mxu0 %v386
        %442 = vmatpush.bf16.msra.mxu0 %v385
        %443 = vmatpush.bf16.msra.mxu0 %v384
        %444 = vmatpush.bf16.msra.mxu0 %v383
        %445 = vmatpush.bf16.msra.mxu0 %v382
        %446 = vmatpush.bf16.msra.mxu0 %v381
        %447 = vmatmul.bf16.gmra.mxu0 %v409
        %v448 = vpop.f32.mrf.mxu0
        %v449 = vadd.f32 %v435, %v448
        %v450 = vpop.f32.mrf.mxu0
        %v451 = vadd.f32 %v437, %v450
        %452 = vdwg.mxu0
        %453 = vmatpush.bf16.msra.mxu0 %v396
        %454 = vmatpush.bf16.msra.mxu0 %v395
        %455 = vmatpush.bf16.msra.mxu0 %v394
        %456 = vmatpush.bf16.msra.mxu0 %v393
        %457 = vmatpush.bf16.msra.mxu0 %v392
        %458 = vmatpush.bf16.msra.mxu0 %v391
        %459 = vmatpush.bf16.msra.mxu0 %v390
        %460 = vmatpush.bf16.msra.mxu0 %v389
        %461 = vmatmul.bf16.gmra.mxu0 %v410
        %v462 = vpop.f32.mrf.mxu0
        %v463 = vadd.f32 %v449, %v462
        %v464 = vpop.f32.mrf.mxu0
        %v465 = vadd.f32 %v451, %v464
        %466 = vdwg.mxu0
        %v467 = vadd.f32 %v397, %v463
        %v468 = vadd.f32 %v398, %v465
        %vm469 = vcmask 261120
        %470 = vst.msk [vmem:[#allocation2] sm:$0xff] %vm469, %v467
        %vm471 = vcmask 254976
        %472 = vst.msk [vmem:[#allocation2 + $0x8] sm:$0x3] %vm471, %v468
        %v473 = vld [vmem:[#allocation3] sm:$0x3f]
        %v474 = vld [vmem:[%s282] sm:$0x3f]
        %v475 = vld [vmem:[%s282 + $0x8] sm:$0x3f]
        %v476 = vld [vmem:[%s282 + $0x10] sm:$0x3f]
        %v477 = vld [vmem:[%s282 + $0x18] sm:$0x3f]
        %v478 = vpack.c.bf16 %v474, %v474
        %v479 = vpack.c.bf16 %v475, %v475
        %v480 = vpack.c.bf16 %v476, %v476
        %v481 = vpack.c.bf16 %v477, %v477
        %482 = vmatpush.bf16.msra.mxu0 %v372
        %483 = vmatpush.bf16.msra.mxu0 %v371
        %484 = vmatpush.bf16.msra.mxu0 %v370
        %485 = vmatpush.bf16.msra.mxu0 %v369
        %486 = vmatpush.bf16.msra.mxu0 %v368
        %487 = vmatpush.bf16.msra.mxu0 %v367
        %488 = vmatpush.bf16.msra.mxu0 %v366
        %489 = vmatpush.bf16.msra.mxu0 %v365
        %490 = vmatmul.bf16.gmra.mxu0 %v478
        %v491 = vpop.f32.mrf.mxu0
        %v492 = vadd.f32 0.0, %v491
        %v493 = vpop.f32.mrf.mxu0
        %494 = vdwg.mxu0
        %495 = vmatpush.bf16.msra.mxu0 %v380
        %496 = vmatpush.bf16.msra.mxu0 %v379
        %497 = vmatpush.bf16.msra.mxu0 %v378
        %498 = vmatpush.bf16.msra.mxu0 %v377
        %499 = vmatpush.bf16.msra.mxu0 %v376
        %500 = vmatpush.bf16.msra.mxu0 %v375
        %501 = vmatpush.bf16.msra.mxu0 %v374
        %502 = vmatpush.bf16.msra.mxu0 %v373
        %503 = vmatmul.bf16.gmra.mxu0 %v479
        %v504 = vpop.f32.mrf.mxu0
        %v505 = vadd.f32 %v492, %v504
        %v506 = vpop.f32.mrf.mxu0
        %507 = vdwg.mxu0
        %508 = vmatpush.bf16.msra.mxu0 %v388
        %509 = vmatpush.bf16.msra.mxu0 %v387
        %510 = vmatpush.bf16.msra.mxu0 %v386
        %511 = vmatpush.bf16.msra.mxu0 %v385
        %512 = vmatpush.bf16.msra.mxu0 %v384
        %513 = vmatpush.bf16.msra.mxu0 %v383
        %514 = vmatpush.bf16.msra.mxu0 %v382
        %515 = vmatpush.bf16.msra.mxu0 %v381
        %516 = vmatmul.bf16.gmra.mxu0 %v480
        %v517 = vpop.f32.mrf.mxu0
        %v518 = vadd.f32 %v505, %v517
        %v519 = vpop.f32.mrf.mxu0
        %520 = vdwg.mxu0
        %521 = vmatpush.bf16.msra.mxu0 %v396
        %522 = vmatpush.bf16.msra.mxu0 %v395
        %523 = vmatpush.bf16.msra.mxu0 %v394
        %524 = vmatpush.bf16.msra.mxu0 %v393
        %525 = vmatpush.bf16.msra.mxu0 %v392
        %526 = vmatpush.bf16.msra.mxu0 %v391
        %527 = vmatpush.bf16.msra.mxu0 %v390
        %528 = vmatpush.bf16.msra.mxu0 %v389
        %529 = vmatmul.bf16.gmra.mxu0 %v481
        %v530 = vpop.f32.mrf.mxu0
        %v531 = vadd.f32 %v518, %v530
        %v532 = vpop.f32.mrf.mxu0
        %533 = vdwg.mxu0
        %v534 = vadd.f32 %v473, %v531
        %vm535 = vcmask 259072
        %536 = vst.msk [vmem:[#allocation3] sm:$0x3f] %vm535, %v534
        %p537 = scmp.eq.s32.totalorder %s17, 1
        // Predicated region
        $region68: #{protonet_forward.1} parent=58 // pred_check
          %p538 = pneg %p537
        $region69: #{protonet_forward.1} parent=58 // pred_check_branch
          %540 = sbr.rel (%p538) target = $region71
        $region70: #{protonet_forward.1} parent=58 // pred_region
          %v541 = vld [vmem:[#allocation2] sm:$0xff]
          %v542 = vld [vmem:[#allocation2 + $0x8] sm:$0x3]
          %v543 = vld [vmem:[%s3] sm:$0x1]
          %v545 = vperm.slane %v543, 0
          %v547 = vadd.f32 %v541, %v545
          %v548 = vadd.f32 %v542, %v545
          %v549 = vmax.f32 %v547, 0.0
          %v550 = vmax.f32 %v548, 0.0
          %v551 = vld [vmem:[#allocation3] sm:$0x3f]
          %v552 = vadd.f32 %v551, %v545
          %v553 = vmax.f32 %v552, 0.0
          %v554 = vld [vmem:[%s4] sm:$0xf]
          %v555 = vld [vmem:[%s4 + $0x4] sm:$0xf]
          %v556 = vld [vmem:[%s4 + $0x8] sm:$0xf]
          %v557 = vld [vmem:[%s4 + $0xc] sm:$0xf]
          %v558 = vld [vmem:[%s4 + $0x10] sm:$0xf]
          %v559 = vld [vmem:[%s4 + $0x14] sm:$0xf]
          %v560 = vld [vmem:[%s4 + $0x18] sm:$0xf]
          %v561 = vld [vmem:[%s4 + $0x1c] sm:$0xf]
          %v562 = vld [vmem:[%s4 + $0x20] sm:$0xf]
          %v563 = vld [vmem:[%s4 + $0x24] sm:$0xf]
          %v564 = vld [vmem:[%s4 + $0x28] sm:$0xf]
          %v565 = vld [vmem:[%s4 + $0x2c] sm:$0xf]
          %v566 = vld [vmem:[%s4 + $0x30] sm:$0xf]
          %v567 = vld [vmem:[%s4 + $0x34] sm:$0xf]
          %v568 = vld [vmem:[%s4 + $0x38] sm:$0xf]
          %v569 = vld [vmem:[%s4 + $0x3c] sm:$0xf]
          %v570 = vpack.c.bf16 %v550, %v549
          %v587 = vunpack.c.l.b16 %v554
          %v588 = vunpack.c.l.b16 %v555
          %v589 = vunpack.c.l.b16 %v556
          %v590 = vunpack.c.l.b16 %v557
          %v591 = vunpack.c.l.b16 %v558
          %v592 = vunpack.c.l.b16 %v559
          %v593 = vunpack.c.l.b16 %v560
          %v594 = vunpack.c.l.b16 %v561
          %v595 = vunpack.c.l.b16 %v562
          %v596 = vunpack.c.l.b16 %v563
          %v597 = vunpack.c.l.b16 %v564
          %v598 = vunpack.c.l.b16 %v565
          %v599 = vunpack.c.l.b16 %v566
          %v600 = vunpack.c.l.b16 %v567
          %v601 = vunpack.c.l.b16 %v568
          %v602 = vunpack.c.l.b16 %v569
          %v603 = vpack.c.b16 %v588, %v587
          %v604 = vpack.c.b16 %v590, %v589
          %v605 = vpack.c.b16 %v592, %v591
          %v606 = vpack.c.b16 %v594, %v593
          %v607 = vpack.c.b16 %v596, %v595
          %v608 = vpack.c.b16 %v598, %v597
          %v609 = vpack.c.b16 %v600, %v599
          %v610 = vpack.c.b16 %v602, %v601
          %vm611 = vcmask 80896
          %v613 = vsel %vm611, %v603, 0
          %v616 = vsel %vm611, %v604, 0
          %v619 = vsel %vm611, %v605, 0
          %v622 = vsel %vm611, %v606, 0
          %v625 = vsel %vm611, %v607, 0
          %v628 = vsel %vm611, %v608, 0
          %v631 = vsel %vm611, %v609, 0
          %v634 = vsel %vm611, %v610, 0
          %vm636 = vcmask 1044480
          %v638 = vsel %vm636, %v570, 0
          %640 = vmatpush.bf16.msra.mxu0 0
          %641 = vmatpush.bf16.msra.mxu0 0
          %642 = vmatpush.bf16.msra.mxu0 0
          %643 = vmatpush.bf16.msra.mxu0 0
          %644 = vmatpush.bf16.msra.mxu0 0
          %645 = vmatpush.bf16.msra.mxu0 0
          %646 = vmatpush.bf16.msra.mxu0 0
          %647 = vmatpush.bf16.msra.mxu0 %v638
          %648 = vmatmul.bf16.gmra.mxu0 %v613
          %v649 = vpop.f32.mrf.mxu0
          %v650 = vadd.f32 0.0, %v649
          %v651 = vpop.f32.mrf.mxu0
          %v652 = vadd.f32 0.0, %v651
          %653 = vmatmul.bf16.gmra.mxu0 %v616
          %v654 = vpop.f32.mrf.mxu0
          %v655 = vadd.f32 0.0, %v654
          %v656 = vpop.f32.mrf.mxu0
          %v657 = vadd.f32 0.0, %v656
          %658 = vmatmul.bf16.gmra.mxu0 %v619
          %v659 = vpop.f32.mrf.mxu0
          %v660 = vadd.f32 0.0, %v659
          %v661 = vpop.f32.mrf.mxu0
          %v662 = vadd.f32 0.0, %v661
          %663 = vmatmul.bf16.gmra.mxu0 %v622
          %v664 = vpop.f32.mrf.mxu0
          %v665 = vadd.f32 0.0, %v664
          %v666 = vpop.f32.mrf.mxu0
          %v667 = vadd.f32 0.0, %v666
          %668 = vmatmul.bf16.gmra.mxu0 %v625
          %v669 = vpop.f32.mrf.mxu0
          %v670 = vadd.f32 0.0, %v669
          %v671 = vpop.f32.mrf.mxu0
          %v672 = vadd.f32 0.0, %v671
          %673 = vmatmul.bf16.gmra.mxu0 %v628
          %v674 = vpop.f32.mrf.mxu0
          %v675 = vadd.f32 0.0, %v674
          %v676 = vpop.f32.mrf.mxu0
          %v677 = vadd.f32 0.0, %v676
          %678 = vmatmul.bf16.gmra.mxu0 %v631
          %v679 = vpop.f32.mrf.mxu0
          %v680 = vadd.f32 0.0, %v679
          %v681 = vpop.f32.mrf.mxu0
          %v682 = vadd.f32 0.0, %v681
          %683 = vmatmul.bf16.gmra.mxu0 %v634
          %v684 = vpop.f32.mrf.mxu0
          %v685 = vadd.f32 0.0, %v684
          %v686 = vpop.f32.mrf.mxu0
          %v687 = vadd.f32 0.0, %v686
          %688 = vdwg.mxu0
          %v689 = vmul.f32 %v553, %v553
          %v690 = vsel %vm535, %v689, 0.0
          %691 = vadd.xlane.f32.xlu0 %v690
          %v692 = vpop.xlane.xlu0 %691
          %v693 = vmax.f32 %v692, 1e-12
          %v694 = vrsqrt.pop %v693
          %v695 = vmul.f32 %v694, %v693
          %v696 = vmul.f32 %v695, %v694
          %v697 = vmul.f32 0.5, %v696
          %v698 = vsub.f32 1.5, %v697
          %v699 = vmul.f32 %v694, %v698
          %vm700 = vweird.f32 %v693
          %vm701 = vweird.f32 %v694
          %vm702 = vmor %vm700, %vm701
          %v703 = vsel %vm702, %v694, %v699
          %v704 = vmul.f32 %v650, %v650
          %v705 = vmul.f32 %v652, %v652
          %v706 = vmul.f32 %v655, %v655
          %v707 = vmul.f32 %v657, %v657
          %v708 = vmul.f32 %v660, %v660
          %v709 = vmul.f32 %v662, %v662
          %v710 = vmul.f32 %v665, %v665
          %v711 = vmul.f32 %v667, %v667
          %v712 = vmul.f32 %v670, %v670
          %v713 = vmul.f32 %v672, %v672
          %v714 = vmul.f32 %v675, %v675
          %v715 = vmul.f32 %v677, %v677
          %v716 = vmul.f32 %v680, %v680
          %v717 = vmul.f32 %v682, %v682
          %v718 = vmul.f32 %v685, %v685
          %v719 = vmul.f32 %v687, %v687
          %v720 = vsel %vm469, %v704, 0.0
          %721 = vadd.xlane.f32.xlu0 %v720
          %v722 = vpop.xlane.xlu0 %721
          %v723 = vsel %vm469, %v705, 0.0
          %724 = vadd.xlane.f32.xlu0 %v723
          %v725 = vpop.xlane.xlu0 %724
          %v726 = vsel %vm469, %v706, 0.0
          %727 = vadd.xlane.f32.xlu0 %v726
          %v728 = vpop.xlane.xlu0 %727
          %v729 = vsel %vm469, %v707, 0.0
          %730 = vadd.xlane.f32.xlu0 %v729
          %v731 = vpop.xlane.xlu0 %730
          %v732 = vsel %vm469, %v708, 0.0
          %733 = vadd.xlane.f32.xlu0 %v732
          %v734 = vpop.xlane.xlu0 %733
          %v735 = vsel %vm469, %v709, 0.0
          %736 = vadd.xlane.f32.xlu0 %v735
          %v737 = vpop.xlane.xlu0 %736
          %v738 = vsel %vm469, %v710, 0.0
          %739 = vadd.xlane.f32.xlu0 %v738
          %v740 = vpop.xlane.xlu0 %739
          %v741 = vsel %vm469, %v711, 0.0
          %742 = vadd.xlane.f32.xlu0 %v741
          %v743 = vpop.xlane.xlu0 %742
          %v744 = vsel %vm469, %v712, 0.0
          %745 = vadd.xlane.f32.xlu0 %v744
          %v746 = vpop.xlane.xlu0 %745
          %v747 = vsel %vm469, %v713, 0.0
          %748 = vadd.xlane.f32.xlu0 %v747
          %v749 = vpop.xlane.xlu0 %748
          %v750 = vsel %vm469, %v714, 0.0
          %751 = vadd.xlane.f32.xlu0 %v750
          %v752 = vpop.xlane.xlu0 %751
          %v753 = vsel %vm469, %v715, 0.0
          %754 = vadd.xlane.f32.xlu0 %v753
          %v755 = vpop.xlane.xlu0 %754
          %v756 = vsel %vm469, %v716, 0.0
          %757 = vadd.xlane.f32.xlu0 %v756
          %v758 = vpop.xlane.xlu0 %757
          %v759 = vsel %vm469, %v717, 0.0
          %760 = vadd.xlane.f32.xlu0 %v759
          %v761 = vpop.xlane.xlu0 %760
          %v762 = vsel %vm469, %v718, 0.0
          %763 = vadd.xlane.f32.xlu0 %v762
          %v764 = vpop.xlane.xlu0 %763
          %v765 = vsel %vm469, %v719, 0.0
          %766 = vadd.xlane.f32.xlu0 %v765
          %v767 = vpop.xlane.xlu0 %766
          %v768 = vmax.f32 %v722, 1e-12
          %v769 = vmax.f32 %v725, 1e-12
          %v770 = vmax.f32 %v728, 1e-12
          %v771 = vmax.f32 %v731, 1e-12
          %v772 = vmax.f32 %v734, 1e-12
          %v773 = vmax.f32 %v737, 1e-12
          %v774 = vmax.f32 %v740, 1e-12
          %v775 = vmax.f32 %v743, 1e-12
          %v776 = vmax.f32 %v746, 1e-12
          %v777 = vmax.f32 %v749, 1e-12
          %v778 = vmax.f32 %v752, 1e-12
          %v779 = vmax.f32 %v755, 1e-12
          %v780 = vmax.f32 %v758, 1e-12
          %v781 = vmax.f32 %v761, 1e-12
          %v782 = vmax.f32 %v764, 1e-12
          %v783 = vmax.f32 %v767, 1e-12
          %v784 = vrsqrt.pop %v768
          %v785 = vmul.f32 %v784, %v768
          %v786 = vmul.f32 %v785, %v784
          %v787 = vmul.f32 0.5, %v786
          %v788 = vsub.f32 1.5, %v787
          %v789 = vmul.f32 %v784, %v788
          %vm790 = vweird.f32 %v768
          %vm791 = vweird.f32 %v784
          %vm792 = vmor %vm790, %vm791
          %v793 = vsel %vm792, %v784, %v789
          %v794 = vrsqrt.pop %v769
          %v795 = vmul.f32 %v794, %v769
          %v796 = vmul.f32 %v795, %v794
          %v797 = vmul.f32 0.5, %v796
          %v798 = vsub.f32 1.5, %v797
          %v799 = vmul.f32 %v794, %v798
          %vm800 = vweird.f32 %v769
          %vm801 = vweird.f32 %v794
          %vm802 = vmor %vm800, %vm801
          %v803 = vsel %vm802, %v794, %v799
          %v804 = vrsqrt.pop %v770
          %v805 = vmul.f32 %v804, %v770
          %v806 = vmul.f32 %v805, %v804
          %v807 = vmul.f32 0.5, %v806
          %v808 = vsub.f32 1.5, %v807
          %v809 = vmul.f32 %v804, %v808
          %vm810 = vweird.f32 %v770
          %vm811 = vweird.f32 %v804
          %vm812 = vmor %vm810, %vm811
          %v813 = vsel %vm812, %v804, %v809
          %v814 = vrsqrt.pop %v771
          %v815 = vmul.f32 %v814, %v771
          %v816 = vmul.f32 %v815, %v814
          %v817 = vmul.f32 0.5, %v816
          %v818 = vsub.f32 1.5, %v817
          %v819 = vmul.f32 %v814, %v818
          %vm820 = vweird.f32 %v771
          %vm821 = vweird.f32 %v814
          %vm822 = vmor %vm820, %vm821
          %v823 = vsel %vm822, %v814, %v819
          %v824 = vrsqrt.pop %v772
          %v825 = vmul.f32 %v824, %v772
          %v826 = vmul.f32 %v825, %v824
          %v827 = vmul.f32 0.5, %v826
          %v828 = vsub.f32 1.5, %v827
          %v829 = vmul.f32 %v824, %v828
          %vm830 = vweird.f32 %v772
          %vm831 = vweird.f32 %v824
          %vm832 = vmor %vm830, %vm831
          %v833 = vsel %vm832, %v824, %v829
          %v834 = vrsqrt.pop %v773
          %v835 = vmul.f32 %v834, %v773
          %v836 = vmul.f32 %v835, %v834
          %v837 = vmul.f32 0.5, %v836
          %v838 = vsub.f32 1.5, %v837
          %v839 = vmul.f32 %v834, %v838
          %vm840 = vweird.f32 %v773
          %vm841 = vweird.f32 %v834
          %vm842 = vmor %vm840, %vm841
          %v843 = vsel %vm842, %v834, %v839
          %v844 = vrsqrt.pop %v774
          %v845 = vmul.f32 %v844, %v774
          %v846 = vmul.f32 %v845, %v844
          %v847 = vmul.f32 0.5, %v846
          %v848 = vsub.f32 1.5, %v847
          %v849 = vmul.f32 %v844, %v848
          %vm850 = vweird.f32 %v774
          %vm851 = vweird.f32 %v844
          %vm852 = vmor %vm850, %vm851
          %v853 = vsel %vm852, %v844, %v849
          %v854 = vrsqrt.pop %v775
          %v855 = vmul.f32 %v854, %v775
          %v856 = vmul.f32 %v855, %v854
          %v857 = vmul.f32 0.5, %v856
          %v858 = vsub.f32 1.5, %v857
          %v859 = vmul.f32 %v854, %v858
          %vm860 = vweird.f32 %v775
          %vm861 = vweird.f32 %v854
          %vm862 = vmor %vm860, %vm861
          %v863 = vsel %vm862, %v854, %v859
          %v864 = vrsqrt.pop %v776
          %v865 = vmul.f32 %v864, %v776
          %v866 = vmul.f32 %v865, %v864
          %v867 = vmul.f32 0.5, %v866
          %v868 = vsub.f32 1.5, %v867
          %v869 = vmul.f32 %v864, %v868
          %vm870 = vweird.f32 %v776
          %vm871 = vweird.f32 %v864
          %vm872 = vmor %vm870, %vm871
          %v873 = vsel %vm872, %v864, %v869
          %v874 = vrsqrt.pop %v777
          %v875 = vmul.f32 %v874, %v777
          %v876 = vmul.f32 %v875, %v874
          %v877 = vmul.f32 0.5, %v876
          %v878 = vsub.f32 1.5, %v877
          %v879 = vmul.f32 %v874, %v878
          %vm880 = vweird.f32 %v777
          %vm881 = vweird.f32 %v874
          %vm882 = vmor %vm880, %vm881
          %v883 = vsel %vm882, %v874, %v879
          %v884 = vrsqrt.pop %v778
          %v885 = vmul.f32 %v884, %v778
          %v886 = vmul.f32 %v885, %v884
          %v887 = vmul.f32 0.5, %v886
          %v888 = vsub.f32 1.5, %v887
          %v889 = vmul.f32 %v884, %v888
          %vm890 = vweird.f32 %v778
          %vm891 = vweird.f32 %v884
          %vm892 = vmor %vm890, %vm891
          %v893 = vsel %vm892, %v884, %v889
          %v894 = vrsqrt.pop %v779
          %v895 = vmul.f32 %v894, %v779
          %v896 = vmul.f32 %v895, %v894
          %v897 = vmul.f32 0.5, %v896
          %v898 = vsub.f32 1.5, %v897
          %v899 = vmul.f32 %v894, %v898
          %vm900 = vweird.f32 %v779
          %vm901 = vweird.f32 %v894
          %vm902 = vmor %vm900, %vm901
          %v903 = vsel %vm902, %v894, %v899
          %v904 = vrsqrt.pop %v780
          %v905 = vmul.f32 %v904, %v780
          %v906 = vmul.f32 %v905, %v904
          %v907 = vmul.f32 0.5, %v906
          %v908 = vsub.f32 1.5, %v907
          %v909 = vmul.f32 %v904, %v908
          %vm910 = vweird.f32 %v780
          %vm911 = vweird.f32 %v904
          %vm912 = vmor %vm910, %vm911
          %v913 = vsel %vm912, %v904, %v909
          %v914 = vrsqrt.pop %v781
          %v915 = vmul.f32 %v914, %v781
          %v916 = vmul.f32 %v915, %v914
          %v917 = vmul.f32 0.5, %v916
          %v918 = vsub.f32 1.5, %v917
          %v919 = vmul.f32 %v914, %v918
          %vm920 = vweird.f32 %v781
          %vm921 = vweird.f32 %v914
          %vm922 = vmor %vm920, %vm921
          %v923 = vsel %vm922, %v914, %v919
          %v924 = vrsqrt.pop %v782
          %v925 = vmul.f32 %v924, %v782
          %v926 = vmul.f32 %v925, %v924
          %v927 = vmul.f32 0.5, %v926
          %v928 = vsub.f32 1.5, %v927
          %v929 = vmul.f32 %v924, %v928
          %vm930 = vweird.f32 %v782
          %vm931 = vweird.f32 %v924
          %vm932 = vmor %vm930, %vm931
          %v933 = vsel %vm932, %v924, %v929
          %v934 = vrsqrt.pop %v783
          %v935 = vmul.f32 %v934, %v783
          %v936 = vmul.f32 %v935, %v934
          %v937 = vmul.f32 0.5, %v936
          %v938 = vsub.f32 1.5, %v937
          %v939 = vmul.f32 %v934, %v938
          %vm940 = vweird.f32 %v783
          %vm941 = vweird.f32 %v934
          %vm942 = vmor %vm940, %vm941
          %v943 = vsel %vm942, %v934, %v939
          %v944 = vmul.f32 %v553, %v703
          %v945 = vmul.f32 %v650, %v793
          %v946 = vmul.f32 %v652, %v803
          %v947 = vmul.f32 %v655, %v813
          %v948 = vmul.f32 %v657, %v823
          %v949 = vmul.f32 %v660, %v833
          %v950 = vmul.f32 %v662, %v843
          %v951 = vmul.f32 %v665, %v853
          %v952 = vmul.f32 %v667, %v863
          %v953 = vmul.f32 %v670, %v873
          %v954 = vmul.f32 %v672, %v883
          %v955 = vmul.f32 %v675, %v893
          %v956 = vmul.f32 %v677, %v903
          %v957 = vmul.f32 %v680, %v913
          %v958 = vmul.f32 %v682, %v923
          %v959 = vmul.f32 %v685, %v933
          %v960 = vmul.f32 %v687, %v943
          %v962 = vsel %vm469, %v944, 0
          %v965 = vsel %vm469, %v945, 0
          %v968 = vsel %vm469, %v946, 0
          %v971 = vsel %vm469, %v947, 0
          %v974 = vsel %vm469, %v948, 0
          %v977 = vsel %vm469, %v949, 0
          %v980 = vsel %vm469, %v950, 0
          %v983 = vsel %vm469, %v951, 0
          %v986 = vsel %vm469, %v952, 0
          %v989 = vsel %vm469, %v953, 0
          %v992 = vsel %vm469, %v954, 0
          %v995 = vsel %vm469, %v955, 0
          %v998 = vsel %vm469, %v956, 0
          %v1001 = vsel %vm469, %v957, 0
          %v1004 = vsel %vm469, %v958, 0
          %v1007 = vsel %vm469, %v959, 0
          %v1010 = vsel %vm469, %v960, 0
          %1012 = vmatpush.xpose.msra.mxu0 %v1010
          %1013 = vmatpush.xpose.msra.mxu0 %v1007
          %1014 = vmatpush.xpose.msra.mxu0 %v1004
          %1015 = vmatpush.xpose.msra.mxu0 %v1001
          %1016 = vmatpush.xpose.msra.mxu0 %v998
          %1017 = vmatpush.xpose.msra.mxu0 %v995
          %1018 = vmatpush.xpose.msra.mxu0 %v992
          %1019 = vmatpush.xpose.msra.mxu0 %v989
          %1020 = vmatpush.xpose.msra.mxu0 %v986
          %1021 = vmatpush.xpose.msra.mxu0 %v983
          %1022 = vmatpush.xpose.msra.mxu0 %v980
          %1023 = vmatpush.xpose.msra.mxu0 %v977
          %1024 = vmatpush.xpose.msra.mxu0 %v974
          %1025 = vmatpush.xpose.msra.mxu0 %v971
          %1026 = vmatpush.xpose.msra.mxu0 %v968
          %1027 = vmatpush.xpose.msra.mxu0 %v965
          %1028 = vmatmul.f32.gmra.mxu0 %v962
          %v1029 = vpop.f32.mrf.mxu0
          %v1030 = vadd.f32 0.0, %v1029
          %1031 = vdwg.mxu0
          %1032 = vst [vmem:[#allocation5] sm:$0x3f] %v1030
        $region71: #{protonet_forward.1} parent=58 // pred_fallthru
          _
        // Predicated region
        $region72: #{protonet_forward.1} parent=58 // pred_check
          %p1033 = pneg %p150
        $region73: #{protonet_forward.1} parent=58 // pred_check_branch
          %1035 = sbr.rel (%p1033) target = $region75
        $region74: #{protonet_forward.1} parent=58 // pred_region
          %1037 = vsyncadd [#allocation6], 0
          %s1039 = sshll.u32 [#allocation5], 4
          %s1040 = int_to_ptr.vmem [resolvable:$true] %s1039
          %s1041 = sshll.u32 %s5, 4
          %s1042 = int_to_ptr.hbm [resolvable:$true] %s1041
          %1044 = dma.vmem_to_hbm [thread:$0]  %s1040, 128, %s1042, [#allocation6]
        $region75: #{protonet_forward.1} parent=58 // pred_fallthru
          _
        // Predicated region
        $region76: #{protonet_forward.1} parent=58 // pred_check
          %p1045 = pneg %p150
        $region77: #{protonet_forward.1} parent=58 // pred_check_branch
          %1047 = sbr.rel (%p1045) target = $region79
        $region78: #{protonet_forward.1} parent=58 // pred_region
          %1049 = dma.done [#allocation6], 128
        $region79: #{protonet_forward.1} parent=58 // pred_fallthru
          _
      $region59: #{protonet_forward.1} parent=5 // pred_fallthru
        _
      %p1050 = scmp.le.s32.totalorder 2, %s12
      // Predicated region
      $region80: #{protonet_forward.1} parent=5 // pred_check
        %p1051 = pneg %p1050
      $region81: #{protonet_forward.1} parent=5 // pred_check_branch
        %1053 = sbr.rel (%p1051) target = $region83
      $region82: #{protonet_forward.1} parent=5 // pred_region
        %s1054 = ssub.s32 %s12, 2
      $region83: #{protonet_forward.1} parent=5 // pred_fallthru
        _
    $region6: #{protonet_forward.1} parent=1 // loop_footer
      %s16 = sadd.s32 1, %s12
    $region7: #{protonet_forward.1} parent=1 // loop_footer_branch
      %11 = sbr.rel target = $region3
    $region8: #{protonet_forward.1} parent=1 // loop_exit
      _
    %1055 = vsyncpa [#allocation6], 1
    %s1056 = scalar_lea.sflag [#allocation6], 1
    %1057 = vsyncpa %s1056, 1

</llo_original>
